<compile_context>
chip_gen: v7x
topology: tpu7x:2x2x1
jax: 0.10.0
libtpu: 0.0.40
codegen_flags: <defaults>
</compile_context>

<pallas_src>
import functools

import jax
import jax.numpy as jnp
import numpy as np
from jax import lax
from jax.experimental import pallas as pl
from jax.experimental.pallas import tpu as pltpu


# --------------------------------------------------------------------------- kernel

def _resblock_kernel(x_ref, wt1_ref, b1_ref, wt2_ref, b2_ref, out_ref, *,
                     Hp, WC, R, bn, mxu_dtype):
    """One grid step processes `bn` images.

    x_ref  : (bn, Hp, R*WC)        packed channels-last rows (Hp = H/R, WC = W*C)
    wt*_ref: ((R+2)*WC, R*WC)      block-Toeplitz conv weight, BN scale folded in
    b*_ref : (1, R*WC)             lane-dense folded BN bias
    out_ref: (bn, Hp, R*WC)
    """
    RW = R * WC
    x = x_ref[...]  # (bn, Hp, RW) f32

    def conv3x3(v):
        # Build the (R+2)-row im2col slab along the lane axis (im2col over dy only):
        #   lanes [0, WC)       : image row p*R - 1   (vertical halo from packed row p-1)
        #   lanes [WC, WC+RW)   : image rows p*R .. p*R+R-1 (the packed row itself)
        #   lanes [WC+RW, ... ) : image row p*R + R   (vertical halo from packed row p+1)
        # Image-boundary halos are zero rows (the conv's vertical zero padding).
        z = jnp.zeros((bn, 1, WC), v.dtype)
        top = jnp.concatenate([z, v[:, :Hp - 1, RW - WC:]], axis=1)   # row pR-1
        bot = jnp.concatenate([v[:, 1:, :WC], z], axis=1)             # row pR+R
        cat = jnp.concatenate([top, v, bot], axis=-1)                 # (bn, Hp, RW+2*WC)
        # Cast after the (cheap, f32) halo construction: MXU gets bf16 inputs with f32
        # accumulation; f32 slices/concats keep the lowering robust.  (pltpu.roll + iota
        # mask on the packed sublane axis is the further micro-opt once M is large.)
        return cat.reshape(bn * Hp, RW + 2 * WC).astype(mxu_dtype)

    # conv1 (BN1 scale folded into wt1) -> bias -> ReLU : single MXU dot, K=(R+2)*WC
    a1 = jnp.dot(conv3x3(x), wt1_ref[...],
                 preferred_element_type=jnp.float32)                  # (bn*Hp, RW) f32
    y1 = jnp.maximum(a1 + b1_ref[...], 0.0).reshape(bn, Hp, RW)

    # conv2 (BN2 scale folded into wt2) -> bias -> residual add (f32) -> ReLU
    a2 = jnp.dot(conv3x3(y1), wt2_ref[...],
                 preferred_element_type=jnp.float32)                  # (bn*Hp, RW) f32
    out = jnp.maximum(a2 + b2_ref[...] + x.reshape(bn * Hp, RW), 0.0)
    out_ref[...] = out.reshape(bn, Hp, RW)


# --------------------------------------------------------------------------- weight fold

def _fold_weight(w, scale, W, C, R, dtype):
    """PyTorch (C_out, C_in, 3, 3) conv weight + folded-BN scale ->
    block-Toeplitz matrix of shape ((R+2)*W*C, R*W*C) acting on row-packed lanes.

      row index = r*W*C + w_in*C + c_in   (r in [0, R+2): input image row p*R - 1 + r)
      col index = q*W*C + w_out*C + c_out (q in [0, R):   output image row p*R + q)
      value     = weight[c_out, c_in, dy, dx] * scale[c_out]
                  with r = q + dy and w_in = w_out + dx - 1 (out-of-range w_in omitted
                  -> horizontal zero padding).
    """
    w_np = (np.asarray(w, np.float32)
            * np.asarray(scale, np.float32)[:, None, None, None])
    WC = W * C
    wt = np.zeros(((R + 2) * WC, R * WC), np.float32)
    for q in range(R):
        for dy in range(3):
            r = q + dy
            for dx in range(3):
                tap = w_np[:, :, dy, dx].T  # (C_in, C_out), scale folded on c_out
                for wo in range(W):
                    wi = wo + dx - 1
                    if 0 <= wi < W:
                        wt[r * WC + wi * C:r * WC + (wi + 1) * C,
                           q * WC + wo * C:q * WC + (wo + 1) * C] = tap
    return jnp.asarray(wt, dtype)


# --------------------------------------------------------------------------- tiling picks

def _pick_row_pack(H, WC):
    """Smallest R dividing H such that R*WC is a multiple of 128 (full 128-lane rows,
    unmasked stores, MXU N-dim filled).  Fall back to R=1 (generic small-C layout)."""
    for R in (1, 2, 4, 8, 16):
        if H % R == 0 and (R * WC) % 128 == 0:
            return R
    return 1


def _pick_batch_block(N, Hp, m_cap=256, min_grid_steps=1):
    """Largest divisor of N with bn*Hp <= m_cap rows (fills the MXU M dim; 256 matches
    the 256-wide MXU on v6e/v7x).  No forced multi-step split: on single-TC v5e/v6e an
    extra grid step is pure ~0.35us overhead.  Pass min_grid_steps=2 on v7x so both
    TensorCores get a 'parallel' step.  Keep m_cap moderate so the f32 im2col cat does
    not blow vreg pressure into heavy spills."""
    best = 1
    for d in range(1, N + 1):
        if N % d == 0 and d * Hp <= m_cap and N // d >= min_grid_steps:
            best = d
    return best


# --------------------------------------------------------------------------- wrappers

def resblock_plain_packed(x_l, w1, w2, scale1, bias1, scale2, bias2, *, W, C, R,
                          mxu_dtype=jnp.bfloat16, min_grid_steps=1):
    """Packed channels-last entry point (no layout conversion at all).

    x_l: (N, H/R, R*W*C) float32 — R image rows packed per lane slab, channels-last.
    Returns the output in the same packed layout.
    """
    N, Hp, RW = x_l.shape
    WC = W * C
    assert RW == R * WC, "packed input last dim must be R*W*C"

    # BN scales folded into the conv weights; biases made lane-dense over (R*W, C).
    wt1 = _fold_weight(w1, scale1, W, C, R, mxu_dtype)
    wt2 = _fold_weight(w2, scale2, W, C, R, mxu_dtype)
    b1l = jnp.tile(jnp.asarray(bias1, jnp.float32), R * W).reshape(1, RW)
    b2l = jnp.tile(jnp.asarray(bias2, jnp.float32), R * W).reshape(1, RW)

    bn = _pick_batch_block(N, Hp, min_grid_steps=min_grid_steps)
    grid = (N // bn,)
    kernel = functools.partial(_resblock_kernel, Hp=Hp, WC=WC, R=R, bn=bn,
                               mxu_dtype=mxu_dtype)

    # VMEM per step: bn*Hp*RW activations + 2 * (R+2)*WC*R*WC weights — a few hundred KB
    # here.  For large W*C, gate/single-buffer the weight specs and tile the grid over
    # rows (and set vmem_limit_bytes) instead of growing the Toeplitz matrix.
    return pl.pallas_call(
        kernel,
        out_shape=jax.ShapeDtypeStruct((N, Hp, RW), jnp.float32),
        grid_spec=pltpu.PrefetchScalarGridSpec(
            num_scalar_prefetch=0,
            grid=grid,
            in_specs=[
                pl.BlockSpec((bn, Hp, RW), lambda n: (n, 0, 0)),
                pl.BlockSpec(((R + 2) * WC, RW), lambda n: (0, 0)),
                pl.BlockSpec((1, RW), lambda n: (0, 0)),
                pl.BlockSpec(((R + 2) * WC, RW), lambda n: (0, 0)),
                pl.BlockSpec((1, RW), lambda n: (0, 0)),
            ],
            out_specs=pl.BlockSpec((bn, Hp, RW), lambda n: (n, 0, 0)),
        ),
        compiler_params=pltpu.CompilerParams(dimension_semantics=("parallel",)),
    )(x_l, wt1, b1l, wt2, b2l)


def resblock_plain(x_nchw, w1, w2, scale1, bias1, scale2, bias2, *,
                   mxu_dtype=jnp.bfloat16, min_grid_steps=1):
    """NCHW adapter matching the PyTorch module's layout.

    x_nchw: (N, C, H, W) float32.  w1/w2: (C_out, C_in, 3, 3) PyTorch layout.
    scale*/bias*: folded inference-mode BatchNorm parameters (per channel).

    The two transposes below are pure layout adaptation for NCHW callers; channels-last
    producers/consumers should call `resblock_plain_packed` directly and skip both
    HBM passes.  mxu_dtype=jnp.float32 gives a bit-tight match to the f32 reference.
    """
    N, C, H, W = x_nchw.shape
    WC = W * C
    R = _pick_row_pack(H, WC)

    x_l = (jnp.transpose(x_nchw, (0, 2, 3, 1))
           .reshape(N, H // R, R * WC).astype(jnp.float32))
    out_l = resblock_plain_packed(x_l, w1, w2, scale1, bias1, scale2, bias2,
                                  W=W, C=C, R=R, mxu_dtype=mxu_dtype,
                                  min_grid_steps=min_grid_steps)
    return jnp.transpose(out_l.reshape(N, H, W, C), (0, 3, 1, 2))


# --------------------------------------------------------------------------- reference

def _reference(x_nchw, w1, w2, s1, b1, s2, b2):
    """Pure-JAX reference (NCHW) for a numerical sanity check."""
    def conv(x, w):
        return lax.conv_general_dilated(
            x, w, window_strides=(1, 1), padding=((1, 1), (1, 1)),
            dimension_numbers=("NCHW", "OIHW", "NCHW"))

    def bn(y, s, b):
        return y * s[None, :, None, None] + b[None, :, None, None]

    y = jnp.maximum(bn(conv(x_nchw, w1), s1, b1), 0.0)
    y = jnp.maximum(bn(conv(y, w2), s2, b2) + x_nchw, 0.0)
    return y


if __name__ == "__main__":
    N, C, H, W = 2, 4, 16, 16
    key = jax.random.PRNGKey(0)
    kx, kw1, kw2, kg1, kb1, km1, kv1, kg2, kb2, km2, kv2 = jax.random.split(key, 11)

    x = jax.random.normal(kx, (N, C, H, W), jnp.float32)
    w1 = jax.random.normal(kw1, (C, C, 3, 3), jnp.float32) * 0.2
    w2 = jax.random.normal(kw2, (C, C, 3, 3), jnp.float32) * 0.2

    eps = 1e-5
    gamma1 = 1.0 + 0.1 * jax.random.normal(kg1, (C,), jnp.float32)
    beta1 = 0.1 * jax.random.normal(kb1, (C,), jnp.float32)
    mean1 = 0.1 * jax.random.normal(km1, (C,), jnp.float32)
    var1 = 1.0 + 0.1 * jax.random.uniform(kv1, (C,), jnp.float32)
    gamma2 = 1.0 + 0.1 * jax.random.normal(kg2, (C,), jnp.float32)
    beta2 = 0.1 * jax.random.normal(kb2, (C,), jnp.float32)
    mean2 = 0.1 * jax.random.normal(km2, (C,), jnp.float32)
    var2 = 1.0 + 0.1 * jax.random.uniform(kv2, (C,), jnp.float32)

    # Fold BN (inference mode) into per-channel scale/bias.
    scale1 = gamma1 / jnp.sqrt(var1 + eps)
    bias1 = beta1 - mean1 * scale1
    scale2 = gamma2 / jnp.sqrt(var2 + eps)
    bias2 = beta2 - mean2 * scale2

    # f32 MXU path: bit-tight validation against the reference.
    out_f32 = jax.block_until_ready(
        resblock_plain(x, w1, w2, scale1, bias1, scale2, bias2,
                       mxu_dtype=jnp.float32))
    # Default (bf16 MXU inputs, f32 accumulation): throughput path.
    out_bf16 = jax.block_until_ready(
        resblock_plain(x, w1, w2, scale1, bias1, scale2, bias2))

    ref = jax.block_until_ready(_reference(x, w1, w2, scale1, bias1, scale2, bias2))
    np.testing.assert_allclose(np.asarray(out_f32), np.asarray(ref),
                               rtol=1e-4, atol=1e-4)
    # bf16 matmul inputs -> loose tolerance (still catches layout/indexing bugs).
    np.testing.assert_allclose(np.asarray(out_bf16), np.asarray(ref),
                               rtol=1e-1, atol=2.5e-1)

    print("KERNEL_OK")
</pallas_src>

<mosaic_0001>
module attributes {stable_mosaic.version = 11 : i64} {
  func.func @_resblock_kernel(%arg0: i32, %arg1: memref<2x8x128xf32, #tpu.memory_space<vmem>>, %arg2: memref<256x128xf32, #tpu.memory_space<vmem>>, %arg3: memref<1x128xf32, #tpu.memory_space<vmem>>, %arg4: memref<256x128xf32, #tpu.memory_space<vmem>>, %arg5: memref<1x128xf32, #tpu.memory_space<vmem>>, %arg6: memref<2x8x128xf32, #tpu.memory_space<vmem>>) attributes {dimension_semantics = [#tpu.dimension_semantics<parallel>], iteration_bounds = array<i64: 1>, scalar_prefetch = 0 : i64, scratch_operands = 0 : i64, tpu.core_type = #tpu.core_type<tc>, window_params = [{transform_indices = @transform_0, window_bounds = array<i64: 2, 8, 128>}, {pipeline_mode = #tpu.pipeline_mode<synchronous>, transform_indices = @transform_1, window_bounds = array<i64: 256, 128>}, {pipeline_mode = #tpu.pipeline_mode<synchronous>, transform_indices = @transform_2, window_bounds = array<i64: 1, 128>}, {pipeline_mode = #tpu.pipeline_mode<synchronous>, transform_indices = @transform_3, window_bounds = array<i64: 256, 128>}, {pipeline_mode = #tpu.pipeline_mode<synchronous>, transform_indices = @transform_4, window_bounds = array<i64: 1, 128>}, {transform_indices = @transform_5, window_bounds = array<i64: 2, 8, 128>}]} {
    %c0 = arith.constant 0 : index
    %c0_0 = arith.constant 0 : index
    %c0_1 = arith.constant 0 : index
    %0 = vector.load %arg1[%c0, %c0_0, %c0_1] : memref<2x8x128xf32, #tpu.memory_space<vmem>>, vector<2x8x128xf32>
    %cst = arith.constant 0.000000e+00 : f32
    %1 = vector.broadcast %cst : f32 to vector<2x1x64xf32>
    %2 = vector.extract_strided_slice %0 {offsets = [0, 0, 64], sizes = [2, 7, 64], strides = [1, 1, 1]} : vector<2x8x128xf32> to vector<2x7x64xf32>
    %3 = tpu.concatenate %1, %2 in 1 : vector<2x1x64xf32>, vector<2x7x64xf32> -> vector<2x8x64xf32>
    %4 = vector.extract_strided_slice %0 {offsets = [0, 1, 0], sizes = [2, 7, 64], strides = [1, 1, 1]} : vector<2x8x128xf32> to vector<2x7x64xf32>
    %5 = tpu.concatenate %4, %1 in 1 : vector<2x7x64xf32>, vector<2x1x64xf32> -> vector<2x8x64xf32>
    %6 = tpu.concatenate %3, %0, %5 in 2 : vector<2x8x64xf32>, vector<2x8x128xf32>, vector<2x8x64xf32> -> vector<2x8x256xf32>
    %7 = vector.shape_cast %6 : vector<2x8x256xf32> to vector<16x256xf32>
    %c0_2 = arith.constant 0 : index
    %c0_3 = arith.constant 0 : index
    %8 = vector.load %arg2[%c0_2, %c0_3] : memref<256x128xf32, #tpu.memory_space<vmem>>, vector<256x128xf32>
    %cst_4 = arith.constant dense<0.000000e+00> : vector<16x128xf32>
    %9 = tpu.matmul %7, %8, %cst_4 {dimension_numbers = #tpu.dot_dimension_numbers<[1], [0], [0], [1], [0, 0, 1, 1], [], []>} : vector<16x256xf32>, vector<256x128xf32>, vector<16x128xf32> -> vector<16x128xf32>
    %c0_5 = arith.constant 0 : index
    %c0_6 = arith.constant 0 : index
    %10 = vector.load %arg3[%c0_5, %c0_6] : memref<1x128xf32, #tpu.memory_space<vmem>>, vector<1x128xf32>
    %11 = vector.broadcast %10 : vector<1x128xf32> to vector<16x128xf32>
    %12 = arith.addf %9, %11 : vector<16x128xf32>
    %cst_7 = arith.constant 0.000000e+00 : f32
    %13 = vector.broadcast %cst_7 : f32 to vector<16x128xf32>
    %14 = arith.maximumf %12, %13 : vector<16x128xf32>
    %15 = vector.shape_cast %14 : vector<16x128xf32> to vector<2x8x128xf32>
    %cst_8 = arith.constant 0.000000e+00 : f32
    %16 = vector.broadcast %cst_8 : f32 to vector<2x1x64xf32>
    %17 = vector.extract_strided_slice %15 {offsets = [0, 0, 64], sizes = [2, 7, 64], strides = [1, 1, 1]} : vector<2x8x128xf32> to vector<2x7x64xf32>
    %18 = tpu.concatenate %16, %17 in 1 : vector<2x1x64xf32>, vector<2x7x64xf32> -> vector<2x8x64xf32>
    %19 = vector.extract_strided_slice %15 {offsets = [0, 1, 0], sizes = [2, 7, 64], strides = [1, 1, 1]} : vector<2x8x128xf32> to vector<2x7x64xf32>
    %20 = tpu.concatenate %19, %16 in 1 : vector<2x7x64xf32>, vector<2x1x64xf32> -> vector<2x8x64xf32>
    %21 = tpu.concatenate %18, %15, %20 in 2 : vector<2x8x64xf32>, vector<2x8x128xf32>, vector<2x8x64xf32> -> vector<2x8x256xf32>
    %22 = vector.shape_cast %21 : vector<2x8x256xf32> to vector<16x256xf32>
    %c0_9 = arith.constant 0 : index
    %c0_10 = arith.constant 0 : index
    %23 = vector.load %arg4[%c0_9, %c0_10] : memref<256x128xf32, #tpu.memory_space<vmem>>, vector<256x128xf32>
    %cst_11 = arith.constant dense<0.000000e+00> : vector<16x128xf32>
    %24 = tpu.matmul %22, %23, %cst_11 {dimension_numbers = #tpu.dot_dimension_numbers<[1], [0], [0], [1], [0, 0, 1, 1], [], []>} : vector<16x256xf32>, vector<256x128xf32>, vector<16x128xf32> -> vector<16x128xf32>
    %c0_12 = arith.constant 0 : index
    %c0_13 = arith.constant 0 : index
    %25 = vector.load %arg5[%c0_12, %c0_13] : memref<1x128xf32, #tpu.memory_space<vmem>>, vector<1x128xf32>
    %26 = vector.broadcast %25 : vector<1x128xf32> to vector<16x128xf32>
    %27 = arith.addf %24, %26 : vector<16x128xf32>
    %28 = vector.shape_cast %0 : vector<2x8x128xf32> to vector<16x128xf32>
    %29 = arith.addf %27, %28 : vector<16x128xf32>
    %cst_14 = arith.constant 0.000000e+00 : f32
    %30 = vector.broadcast %cst_14 : f32 to vector<16x128xf32>
    %31 = arith.maximumf %29, %30 : vector<16x128xf32>
    %32 = vector.shape_cast %31 : vector<16x128xf32> to vector<2x8x128xf32>
    %c0_15 = arith.constant 0 : index
    %c0_16 = arith.constant 0 : index
    %c0_17 = arith.constant 0 : index
    %33 = vector.load %arg6[%c0_15, %c0_16, %c0_17] : memref<2x8x128xf32, #tpu.memory_space<vmem>>, vector<2x8x128xf32>
    tpu.vector_store %arg6[%c0_15, %c0_16, %c0_17], %32 {strides = array<i32>} : memref<2x8x128xf32, #tpu.memory_space<vmem>>, vector<2x8x128xf32>,
    return
  }
  func.func @transform_0(%arg0: i32) -> (i32, i32, i32) {
    %c0_i32 = arith.constant 0 : i32
    %c0_i32_0 = arith.constant 0 : i32
    %c0_i32_1 = arith.constant 0 : i32
    return %arg0, %c0_i32, %c0_i32_0 : i32, i32, i32
  }
  func.func @transform_1(%arg0: i32) -> (i32, i32) {
    %c0_i32 = arith.constant 0 : i32
    %c0_i32_0 = arith.constant 0 : i32
    %c0_i32_1 = arith.constant 0 : i32
    return %c0_i32, %c0_i32_0 : i32, i32
  }
  func.func @transform_2(%arg0: i32) -> (i32, i32) {
    %c0_i32 = arith.constant 0 : i32
    %c0_i32_0 = arith.constant 0 : i32
    %c0_i32_1 = arith.constant 0 : i32
    return %c0_i32, %c0_i32_0 : i32, i32
  }
  func.func @transform_3(%arg0: i32) -> (i32, i32) {
    %c0_i32 = arith.constant 0 : i32
    %c0_i32_0 = arith.constant 0 : i32
    %c0_i32_1 = arith.constant 0 : i32
    return %c0_i32, %c0_i32_0 : i32, i32
  }
  func.func @transform_4(%arg0: i32) -> (i32, i32) {
    %c0_i32 = arith.constant 0 : i32
    %c0_i32_0 = arith.constant 0 : i32
    %c0_i32_1 = arith.constant 0 : i32
    return %c0_i32, %c0_i32_0 : i32, i32
  }
  func.func @transform_5(%arg0: i32) -> (i32, i32, i32) {
    %c0_i32 = arith.constant 0 : i32
    %c0_i32_0 = arith.constant 0 : i32
    %c0_i32_1 = arith.constant 0 : i32
    return %arg0, %c0_i32, %c0_i32_0 : i32, i32, i32
  }
}

</mosaic_0001>

<llo_original>
// kernel: tpu_custom_call.1
$region0: #{tpu_custom_call.1}
  #allocation0 [shape = 'u32[]', space=smem, size = 0x4, offset = 0x4, fixed_abs, tag = 'smem constant byte address 0x4 - core index']
  #allocation1 [shape = 'u32[144,128]{1,0:T(1,128)}', space=vmem, size = 0x12000, scoped, tag = 'internal scratch']
  %s0 = inlined_call_operand.hbm [shape: f32[2,8,128], index: 0, kind: input, shape index: {}]
  %s1 = inlined_call_operand.hbm [shape: f32[256,128], index: 1, kind: input, shape index: {}]
  %s2 = inlined_call_operand.vmem [shape: f32[1,128], index: 2, kind: input, shape index: {}]
  %s3 = inlined_call_operand.hbm [shape: f32[256,128], index: 3, kind: input, shape index: {}]
  %s4 = inlined_call_operand.vmem [shape: f32[1,128], index: 4, kind: input, shape index: {}]
  %s5 = inlined_call_operand.hbm [shape: f32[2,8,128], index: 5, kind: output, shape index: {}]
  %s6 = sld [smem:[#allocation0]]
  $region42: #{tpu_custom_call.1} parent=0
    _
  %s8 = ssub.s32 1, %s6
  %s9 = scalar_select 0, %s8, %s6
  $region1: #{tpu_custom_call.1} parent=0
    #allocation2 [shape = 'u8[8192]{0}', space=vmem, size = 0x2000, scoped, tag = 'input window, operand 0, single buffered']
    #allocation3 [shape = 's32[1]{0}', space=sflag, size = 0x4, scoped, tag = 'scoped memory for tpu_custom_call.1']
    #allocation4 [shape = 's32[1]{0}', space=sflag, size = 0x4, scoped, tag = 'scoped memory for tpu_custom_call.1']
    #allocation5 [shape = 'u8[131072]{0}', space=vmem, size = 0x20000, scoped, tag = 'input window, operand 1, single buffered']
    #allocation6 [shape = 's32[1]{0}', space=sflag, size = 0x4, scoped, tag = 'scoped memory for tpu_custom_call.1']
    #allocation7 [shape = 'u8[131072]{0}', space=vmem, size = 0x20000, scoped, tag = 'input window, operand 3, single buffered']
    #allocation8 [shape = 'u8[8192]{0}', space=vmem, size = 0x2000, scoped, tag = 'output window, operand 0, single buffered']
    %10 = vsyncpa [#allocation3], 0
    %11 = vsyncpa [#allocation6], 0
    %12 = vsyncpa [#allocation4], 0
    // Predicated region
    $region2: #{tpu_custom_call.1} parent=1 // pred_check
      _
    $region3: #{tpu_custom_call.1} parent=1 // pred_check_branch
      %14 = sbr.rel (0) target = $region5
    $region4: #{tpu_custom_call.1} parent=1 // pred_region
      %s16 = ssub.s32 256, 256
      %17 = vsyncadd [#allocation3], %s16
      %s18 = sshll.u32 [#allocation2], 4
      %s19 = int_to_ptr.vmem [resolvable:$true] %s18
      %24 = dma.hbm_to_vmem [thread:$0]  %s0, 256, %s19, [#allocation3], 128, 128, 8
    $region5: #{tpu_custom_call.1} parent=1 // pred_fallthru
      _
    // Predicated region
    $region6: #{tpu_custom_call.1} parent=1 // pred_check
      _
    $region7: #{tpu_custom_call.1} parent=1 // pred_check_branch
      %26 = sbr.rel (0) target = $region9
    $region8: #{tpu_custom_call.1} parent=1 // pred_region
      %s28 = ssub.s32 4096, 4096
      %29 = vsyncadd [#allocation6], %s28
      %s30 = sshll.u32 [#allocation5], 4
      %s31 = int_to_ptr.vmem [resolvable:$true] %s30
      %36 = dma.hbm_to_vmem [thread:$0]  %s1, 4096, %s31, [#allocation6], 128, 128, 8
    $region9: #{tpu_custom_call.1} parent=1 // pred_fallthru
      _
    // Predicated region
    $region10: #{tpu_custom_call.1} parent=1 // pred_check
      _
    $region11: #{tpu_custom_call.1} parent=1 // pred_check_branch
      %38 = sbr.rel (0) target = $region13
    $region12: #{tpu_custom_call.1} parent=1 // pred_region
      _
    $region13: #{tpu_custom_call.1} parent=1 // pred_fallthru
      _
    // Predicated region
    $region14: #{tpu_custom_call.1} parent=1 // pred_check
      _
    $region15: #{tpu_custom_call.1} parent=1 // pred_check_branch
      %40 = sbr.rel (0) target = $region17
    $region16: #{tpu_custom_call.1} parent=1 // pred_region
      %s42 = ssub.s32 4096, 4096
      %43 = vsyncadd [#allocation6], %s42
      %s44 = sshll.u32 [#allocation7], 4
      %s45 = int_to_ptr.vmem [resolvable:$true] %s44
      %50 = dma.hbm_to_vmem [thread:$0]  %s3, 4096, %s45, [#allocation6], 128, 128, 8
    $region17: #{tpu_custom_call.1} parent=1 // pred_fallthru
      _
    // Predicated region
    $region18: #{tpu_custom_call.1} parent=1 // pred_check
      _
    $region19: #{tpu_custom_call.1} parent=1 // pred_check_branch
      %52 = sbr.rel (0) target = $region21
    $region20: #{tpu_custom_call.1} parent=1 // pred_region
      _
    $region21: #{tpu_custom_call.1} parent=1 // pred_fallthru
      _
    // Predicated region
    $region22: #{tpu_custom_call.1} parent=1 // pred_check
      _
    $region23: #{tpu_custom_call.1} parent=1 // pred_check_branch
      %54 = sbr.rel (0) target = $region25
    $region24: #{tpu_custom_call.1} parent=1 // pred_region
      %55 = dma.done [#allocation3], 256
    $region25: #{tpu_custom_call.1} parent=1 // pred_fallthru
      _
    // Predicated region
    $region26: #{tpu_custom_call.1} parent=1 // pred_check
      _
    $region27: #{tpu_custom_call.1} parent=1 // pred_check_branch
      %57 = sbr.rel (0) target = $region29
    $region28: #{tpu_custom_call.1} parent=1 // pred_region
      %58 = dma.done [#allocation6], 4096
    $region29: #{tpu_custom_call.1} parent=1 // pred_fallthru
      _
    // Predicated region
    $region30: #{tpu_custom_call.1} parent=1 // pred_check
      _
    $region31: #{tpu_custom_call.1} parent=1 // pred_check_branch
      %60 = sbr.rel (0) target = $region33
    $region32: #{tpu_custom_call.1} parent=1 // pred_region
      %61 = dma.done [#allocation6], 4096
    $region33: #{tpu_custom_call.1} parent=1 // pred_fallthru
      _
    %v62 = vld [vmem:[#allocation2] sm:$0xff]
    %v63 = vld [vmem:[#allocation2 + $0x8] sm:$0xff]
    %v66 = vrot.slane %v62, 7
    %v67 = vrot.slane %v63, 7
    %68 = vrot.lane.b32.xlu0 %v66, 64
    %v69 = vpop.permute.xlu0 %68
    %70 = vrot.lane.b32.xlu0 %v67, 64
    %v71 = vpop.permute.xlu0 %70
    %vm74 = vcmask 1040384
    %v75 = vsel %vm74, 0.0, %v69
    %v76 = vsel %vm74, 0.0, %v71
    %v77 = vrot.slane %v62, 1
    %v78 = vrot.slane %v63, 1
    %vm81 = vcmask 1046528
    %v82 = vsel %vm81, %v77, 0.0
    %v83 = vsel %vm81, %v78, 0.0
    %84 = vrot.lane.b32.xlu0 %v62, 64
    %v85 = vpop.permute.xlu0 %84
    %86 = vrot.lane.b32.xlu0 %v63, 64
    %v87 = vpop.permute.xlu0 %86
    %92 = vrot.lane.b32.xlu0 %v82, 64
    %v93 = vpop.permute.xlu0 %92
    %94 = vrot.lane.b32.xlu0 %v83, 64
    %v95 = vpop.permute.xlu0 %94
    %vm98 = vcmask 523264
    %v99 = vsel %vm98, %v75, %v85
    %v100 = vsel %vm98, %v76, %v87
    %v101 = vsel %vm98, %v85, %v93
    %v102 = vsel %vm98, %v87, %v95
    %v103 = vld [vmem:[#allocation5] sm:$0xff]
    %v104 = vld [vmem:[#allocation5 + $0x8] sm:$0xff]
    %v105 = vld [vmem:[#allocation5 + $0x10] sm:$0xff]
    %v106 = vld [vmem:[#allocation5 + $0x18] sm:$0xff]
    %v107 = vld [vmem:[#allocation5 + $0x20] sm:$0xff]
    %v108 = vld [vmem:[#allocation5 + $0x28] sm:$0xff]
    %v109 = vld [vmem:[#allocation5 + $0x30] sm:$0xff]
    %v110 = vld [vmem:[#allocation5 + $0x38] sm:$0xff]
    %v111 = vld [vmem:[#allocation5 + $0x40] sm:$0xff]
    %v112 = vld [vmem:[#allocation5 + $0x48] sm:$0xff]
    %v113 = vld [vmem:[#allocation5 + $0x50] sm:$0xff]
    %v114 = vld [vmem:[#allocation5 + $0x58] sm:$0xff]
    %v115 = vld [vmem:[#allocation5 + $0x60] sm:$0xff]
    %v116 = vld [vmem:[#allocation5 + $0x68] sm:$0xff]
    %v117 = vld [vmem:[#allocation5 + $0x70] sm:$0xff]
    %v118 = vld [vmem:[#allocation5 + $0x78] sm:$0xff]
    %v119 = vld [vmem:[#allocation5 + $0x80] sm:$0xff]
    %v120 = vld [vmem:[#allocation5 + $0x88] sm:$0xff]
    %v121 = vld [vmem:[#allocation5 + $0x90] sm:$0xff]
    %v122 = vld [vmem:[#allocation5 + $0x98] sm:$0xff]
    %v123 = vld [vmem:[#allocation5 + $0xa0] sm:$0xff]
    %v124 = vld [vmem:[#allocation5 + $0xa8] sm:$0xff]
    %v125 = vld [vmem:[#allocation5 + $0xb0] sm:$0xff]
    %v126 = vld [vmem:[#allocation5 + $0xb8] sm:$0xff]
    %v127 = vld [vmem:[#allocation5 + $0xc0] sm:$0xff]
    %v128 = vld [vmem:[#allocation5 + $0xc8] sm:$0xff]
    %v129 = vld [vmem:[#allocation5 + $0xd0] sm:$0xff]
    %v130 = vld [vmem:[#allocation5 + $0xd8] sm:$0xff]
    %v131 = vld [vmem:[#allocation5 + $0xe0] sm:$0xff]
    %v132 = vld [vmem:[#allocation5 + $0xe8] sm:$0xff]
    %v133 = vld [vmem:[#allocation5 + $0xf0] sm:$0xff]
    %v134 = vld [vmem:[#allocation5 + $0xf8] sm:$0xff]
    %v135 = vld [vmem:[%s2] sm:$0x1]
    %v137 = vlaneseq
    %v138 = vshrl.u32 %v137, 7
    %v139 = vsub.s32 0, %v138
    %v140 = vrot.slane %v135, %v139
    %142 = vmatprep.subr.mxu0 0.0
    %143 = vmatpush1.msra.mxu0 %v103
    %144 = vmatprep.subr.mxu0 0.0
    %145 = vmatpush1.msra.mxu0 %v104
    %146 = vmatprep.subr.mxu0 0.0
    %147 = vmatpush1.msra.mxu0 %v105
    %148 = vmatprep.subr.mxu0 0.0
    %149 = vmatpush1.msra.mxu0 %v106
    %150 = vmatprep.subr.mxu0 0.0
    %151 = vmatpush1.msra.mxu0 %v107
    %152 = vmatprep.subr.mxu0 0.0
    %153 = vmatpush1.msra.mxu0 %v108
    %154 = vmatprep.subr.mxu0 0.0
    %155 = vmatpush1.msra.mxu0 %v109
    %156 = vmatprep.subr.mxu0 0.0
    %157 = vmatpush1.msra.mxu0 %v110
    %158 = vmatprep.subr.mxu0 0.0
    %159 = vmatpush1.msra.mxu0 %v111
    %160 = vmatprep.subr.mxu0 0.0
    %161 = vmatpush1.msra.mxu0 %v112
    %162 = vmatprep.subr.mxu0 0.0
    %163 = vmatpush1.msra.mxu0 %v113
    %164 = vmatprep.subr.mxu0 0.0
    %165 = vmatpush1.msra.mxu0 %v114
    %166 = vmatprep.subr.mxu0 0.0
    %167 = vmatpush1.msra.mxu0 %v115
    %168 = vmatprep.subr.mxu0 0.0
    %169 = vmatpush1.msra.mxu0 %v116
    %170 = vmatprep.subr.mxu0 0.0
    %171 = vmatpush1.msra.mxu0 %v117
    %172 = vmatprep.subr.mxu0 0.0
    %173 = vmatpush1.msra.mxu0 %v118
    %174 = vmatprep.subr.mxu0 0.0
    %175 = vmatpush1.msra.mxu0 %v119
    %176 = vmatprep.subr.mxu0 0.0
    %177 = vmatpush1.msra.mxu0 %v120
    %178 = vmatprep.subr.mxu0 0.0
    %179 = vmatpush1.msra.mxu0 %v121
    %180 = vmatprep.subr.mxu0 0.0
    %181 = vmatpush1.msra.mxu0 %v122
    %182 = vmatprep.subr.mxu0 0.0
    %183 = vmatpush1.msra.mxu0 %v123
    %184 = vmatprep.subr.mxu0 0.0
    %185 = vmatpush1.msra.mxu0 %v124
    %186 = vmatprep.subr.mxu0 0.0
    %187 = vmatpush1.msra.mxu0 %v125
    %188 = vmatprep.subr.mxu0 0.0
    %189 = vmatpush1.msra.mxu0 %v126
    %190 = vmatprep.subr.mxu0 0.0
    %191 = vmatpush1.msra.mxu0 %v127
    %192 = vmatprep.subr.mxu0 0.0
    %193 = vmatpush1.msra.mxu0 %v128
    %194 = vmatprep.subr.mxu0 0.0
    %195 = vmatpush1.msra.mxu0 %v129
    %196 = vmatprep.subr.mxu0 0.0
    %197 = vmatpush1.msra.mxu0 %v130
    %198 = vmatprep.subr.mxu0 0.0
    %199 = vmatpush1.msra.mxu0 %v131
    %200 = vmatprep.subr.mxu0 0.0
    %201 = vmatpush1.msra.mxu0 %v132
    %202 = vmatprep.subr.mxu0 0.0
    %203 = vmatpush1.msra.mxu0 %v133
    %204 = vmatprep.subr.mxu0 0.0
    %205 = vmatpush1.msra.mxu0 %v134
    %206 = vmatprep.mubr.f32.mxu0 %v101
    %207 = vmatmul.mubr.f32.gmra.mrb[0].mxu0 %v99
    %v208 = vpop.f32.mrb[0].mxu0
    %v209 = vadd.f32 %v140, %v208
    %v210 = vpop.f32.mrb[0].mxu0
    %211 = vmatprep.mubr.f32.mxu0 %v102
    %212 = vmatmul.mubr.f32.gmra.mrb[0].mxu0 %v100
    %v213 = vpop.f32.mrb[0].mxu0
    %v214 = vadd.f32 %v140, %v213
    %v215 = vpop.f32.mrb[0].mxu0
    %216 = vdwg.mxu0
    %v217 = vmax.f32 %v209, 0.0
    %v218 = vmax.f32 %v214, 0.0
    %v221 = vrot.slane %v217, 7
    %v222 = vrot.slane %v218, 7
    %223 = vrot.lane.b32.xlu0 %v221, 64
    %v224 = vpop.permute.xlu0 %223
    %225 = vrot.lane.b32.xlu0 %v222, 64
    %v226 = vpop.permute.xlu0 %225
    %v229 = vsel %vm74, 0.0, %v224
    %v230 = vsel %vm74, 0.0, %v226
    %v231 = vrot.slane %v217, 1
    %v232 = vrot.slane %v218, 1
    %v235 = vsel %vm81, %v231, 0.0
    %v236 = vsel %vm81, %v232, 0.0
    %237 = vrot.lane.b32.xlu0 %v217, 64
    %v238 = vpop.permute.xlu0 %237
    %239 = vrot.lane.b32.xlu0 %v218, 64
    %v240 = vpop.permute.xlu0 %239
    %245 = vrot.lane.b32.xlu0 %v235, 64
    %v246 = vpop.permute.xlu0 %245
    %247 = vrot.lane.b32.xlu0 %v236, 64
    %v248 = vpop.permute.xlu0 %247
    %v251 = vsel %vm98, %v229, %v238
    %v252 = vsel %vm98, %v230, %v240
    %v253 = vsel %vm98, %v238, %v246
    %v254 = vsel %vm98, %v240, %v248
    %v255 = vld [vmem:[#allocation7] sm:$0xff]
    %v256 = vld [vmem:[#allocation7 + $0x8] sm:$0xff]
    %v257 = vld [vmem:[#allocation7 + $0x10] sm:$0xff]
    %v258 = vld [vmem:[#allocation7 + $0x18] sm:$0xff]
    %v259 = vld [vmem:[#allocation7 + $0x20] sm:$0xff]
    %v260 = vld [vmem:[#allocation7 + $0x28] sm:$0xff]
    %v261 = vld [vmem:[#allocation7 + $0x30] sm:$0xff]
    %v262 = vld [vmem:[#allocation7 + $0x38] sm:$0xff]
    %v263 = vld [vmem:[#allocation7 + $0x40] sm:$0xff]
    %v264 = vld [vmem:[#allocation7 + $0x48] sm:$0xff]
    %v265 = vld [vmem:[#allocation7 + $0x50] sm:$0xff]
    %v266 = vld [vmem:[#allocation7 + $0x58] sm:$0xff]
    %v267 = vld [vmem:[#allocation7 + $0x60] sm:$0xff]
    %v268 = vld [vmem:[#allocation7 + $0x68] sm:$0xff]
    %v269 = vld [vmem:[#allocation7 + $0x70] sm:$0xff]
    %v270 = vld [vmem:[#allocation7 + $0x78] sm:$0xff]
    %v271 = vld [vmem:[#allocation7 + $0x80] sm:$0xff]
    %v272 = vld [vmem:[#allocation7 + $0x88] sm:$0xff]
    %v273 = vld [vmem:[#allocation7 + $0x90] sm:$0xff]
    %v274 = vld [vmem:[#allocation7 + $0x98] sm:$0xff]
    %v275 = vld [vmem:[#allocation7 + $0xa0] sm:$0xff]
    %v276 = vld [vmem:[#allocation7 + $0xa8] sm:$0xff]
    %v277 = vld [vmem:[#allocation7 + $0xb0] sm:$0xff]
    %v278 = vld [vmem:[#allocation7 + $0xb8] sm:$0xff]
    %v279 = vld [vmem:[#allocation7 + $0xc0] sm:$0xff]
    %v280 = vld [vmem:[#allocation7 + $0xc8] sm:$0xff]
    %v281 = vld [vmem:[#allocation7 + $0xd0] sm:$0xff]
    %v282 = vld [vmem:[#allocation7 + $0xd8] sm:$0xff]
    %v283 = vld [vmem:[#allocation7 + $0xe0] sm:$0xff]
    %v284 = vld [vmem:[#allocation7 + $0xe8] sm:$0xff]
    %v285 = vld [vmem:[#allocation7 + $0xf0] sm:$0xff]
    %v286 = vld [vmem:[#allocation7 + $0xf8] sm:$0xff]
    %v287 = vld [vmem:[%s4] sm:$0x1]
    %v289 = vlaneseq
    %v290 = vshrl.u32 %v289, 7
    %v291 = vsub.s32 0, %v290
    %v292 = vrot.slane %v287, %v291
    %294 = vmatprep.subr.mxu0 0.0
    %295 = vmatpush1.msra.mxu0 %v255
    %296 = vmatprep.subr.mxu0 0.0
    %297 = vmatpush1.msra.mxu0 %v256
    %298 = vmatprep.subr.mxu0 0.0
    %299 = vmatpush1.msra.mxu0 %v257
    %300 = vmatprep.subr.mxu0 0.0
    %301 = vmatpush1.msra.mxu0 %v258
    %302 = vmatprep.subr.mxu0 0.0
    %303 = vmatpush1.msra.mxu0 %v259
    %304 = vmatprep.subr.mxu0 0.0
    %305 = vmatpush1.msra.mxu0 %v260
    %306 = vmatprep.subr.mxu0 0.0
    %307 = vmatpush1.msra.mxu0 %v261
    %308 = vmatprep.subr.mxu0 0.0
    %309 = vmatpush1.msra.mxu0 %v262
    %310 = vmatprep.subr.mxu0 0.0
    %311 = vmatpush1.msra.mxu0 %v263
    %312 = vmatprep.subr.mxu0 0.0
    %313 = vmatpush1.msra.mxu0 %v264
    %314 = vmatprep.subr.mxu0 0.0
    %315 = vmatpush1.msra.mxu0 %v265
    %316 = vmatprep.subr.mxu0 0.0
    %317 = vmatpush1.msra.mxu0 %v266
    %318 = vmatprep.subr.mxu0 0.0
    %319 = vmatpush1.msra.mxu0 %v267
    %320 = vmatprep.subr.mxu0 0.0
    %321 = vmatpush1.msra.mxu0 %v268
    %322 = vmatprep.subr.mxu0 0.0
    %323 = vmatpush1.msra.mxu0 %v269
    %324 = vmatprep.subr.mxu0 0.0
    %325 = vmatpush1.msra.mxu0 %v270
    %326 = vmatprep.subr.mxu0 0.0
    %327 = vmatpush1.msra.mxu0 %v271
    %328 = vmatprep.subr.mxu0 0.0
    %329 = vmatpush1.msra.mxu0 %v272
    %330 = vmatprep.subr.mxu0 0.0
    %331 = vmatpush1.msra.mxu0 %v273
    %332 = vmatprep.subr.mxu0 0.0
    %333 = vmatpush1.msra.mxu0 %v274
    %334 = vmatprep.subr.mxu0 0.0
    %335 = vmatpush1.msra.mxu0 %v275
    %336 = vmatprep.subr.mxu0 0.0
    %337 = vmatpush1.msra.mxu0 %v276
    %338 = vmatprep.subr.mxu0 0.0
    %339 = vmatpush1.msra.mxu0 %v277
    %340 = vmatprep.subr.mxu0 0.0
    %341 = vmatpush1.msra.mxu0 %v278
    %342 = vmatprep.subr.mxu0 0.0
    %343 = vmatpush1.msra.mxu0 %v279
    %344 = vmatprep.subr.mxu0 0.0
    %345 = vmatpush1.msra.mxu0 %v280
    %346 = vmatprep.subr.mxu0 0.0
    %347 = vmatpush1.msra.mxu0 %v281
    %348 = vmatprep.subr.mxu0 0.0
    %349 = vmatpush1.msra.mxu0 %v282
    %350 = vmatprep.subr.mxu0 0.0
    %351 = vmatpush1.msra.mxu0 %v283
    %352 = vmatprep.subr.mxu0 0.0
    %353 = vmatpush1.msra.mxu0 %v284
    %354 = vmatprep.subr.mxu0 0.0
    %355 = vmatpush1.msra.mxu0 %v285
    %356 = vmatprep.subr.mxu0 0.0
    %357 = vmatpush1.msra.mxu0 %v286
    %358 = vmatprep.mubr.f32.mxu0 %v253
    %359 = vmatmul.mubr.f32.gmra.mrb[0].mxu0 %v251
    %v360 = vpop.f32.mrb[0].mxu0
    %v361 = vadd.f32 %v292, %v360
    %v362 = vpop.f32.mrb[0].mxu0
    %363 = vmatprep.mubr.f32.mxu0 %v254
    %364 = vmatmul.mubr.f32.gmra.mrb[0].mxu0 %v252
    %v365 = vpop.f32.mrb[0].mxu0
    %v366 = vadd.f32 %v292, %v365
    %v367 = vpop.f32.mrb[0].mxu0
    %368 = vdwg.mxu0
    %v369 = vadd.f32 %v361, %v62
    %v370 = vadd.f32 %v366, %v63
    %v371 = vmax.f32 %v369, 0.0
    %v372 = vmax.f32 %v370, 0.0
    %373 = vst [vmem:[#allocation8] sm:$0xff] %v371
    %374 = vst [vmem:[#allocation8 + $0x8] sm:$0xff] %v372
    // Predicated region
    $region34: #{tpu_custom_call.1} parent=1 // pred_check
      _
    $region35: #{tpu_custom_call.1} parent=1 // pred_check_branch
      %376 = sbr.rel (0) target = $region37
    $region36: #{tpu_custom_call.1} parent=1 // pred_region
      %s378 = ssub.s32 256, 256
      %379 = vsyncadd [#allocation4], %s378
      %s380 = sshll.u32 [#allocation8], 4
      %s381 = int_to_ptr.vmem [resolvable:$true] %s380
      %386 = dma.vmem_to_hbm [thread:$0]  %s381, 256, %s5, [#allocation4], 128, 128, 8
    $region37: #{tpu_custom_call.1} parent=1 // pred_fallthru
      _
    // Predicated region
    $region38: #{tpu_custom_call.1} parent=1 // pred_check
      _
    $region39: #{tpu_custom_call.1} parent=1 // pred_check_branch
      %388 = sbr.rel (0) target = $region41
    $region40: #{tpu_custom_call.1} parent=1 // pred_region
      %389 = dma.done [#allocation4], 256
    $region41: #{tpu_custom_call.1} parent=1 // pred_fallthru
      _
    %390 = vsyncpa [#allocation3], 1
    %391 = vsyncpa [#allocation6], 1
    %392 = vsyncpa [#allocation4], 1

</llo_original>
